<compile_context>
chip_gen: v6e
topology: v6e:2x2x1
jax: 0.10.0
libtpu: 0.0.40
codegen_flags: <defaults>
</compile_context>

<pallas_src>
import jax
import jax.numpy as jnp
import numpy as np
from jax.experimental import pallas as pl
from jax.experimental.pallas import tpu as pltpu


# ----------------------------------------------------------------------------
# In-kernel helper: 3x3 "same" conv + affine + ReLU via im2col, one matmul
# ----------------------------------------------------------------------------
def _conv3x3_rows(x_ref, w_ref, scale_ref, shift_ref, xp_scr, col_scr):
    """Returns ReLU(affine(conv3x3(x))) as an (H*W, Cout) f32 value.

    x_ref:   (1, H, W, Cin) bf16 block (one image)
    w_ref:   (9*Cin, Cout)  bf16, tap-major rows (tap = kh*3+kw, cross-corr)
    scale_ref, shift_ref: (1, Cout) f32 (folded BN / bias)
    xp_scr:  (H+2, W+2, Cin) f32 VMEM scratch (zero-padded input)
    col_scr: (H*W, 9*Cin)    bf16 VMEM scratch (im2col matrix)
    """
    _, H, W, C = x_ref.shape
    # Zero-pad inside the kernel (no HBM-level jnp.pad in the wrapper).
    xp_scr[...] = jnp.zeros(xp_scr.shape, xp_scr.dtype)
    xp_scr[1:H + 1, 1:W + 1, :] = x_ref[0].astype(xp_scr.dtype)
    # im2col: one lane-aligned store per tap, then a single K=9*Cin matmul.
    for kh in range(3):
        for kw in range(3):
            t = kh * 3 + kw
            patch = xp_scr[kh:kh + H, kw:kw + W, :].reshape(H * W, C)
            col_scr[:, t * C:(t + 1) * C] = patch.astype(col_scr.dtype)
    acc = jnp.dot(col_scr[...], w_ref[...], preferred_element_type=jnp.float32)
    return jnp.maximum(acc * scale_ref[...] + shift_ref[...], 0.0)


# ----------------------------------------------------------------------------
# Pallas kernels
# ----------------------------------------------------------------------------
def _stem_kernel(x_ref, w_ref, b_ref, pool_ref, out_ref):
    # 1x1 conv (Cin=3) + bias + ReLU + 2x2 mean pool, fused.
    _, H, W, Cin = x_ref.shape
    C = out_ref.shape[-1]
    x = x_ref[...].reshape(H * W, Cin)
    z = jnp.dot(x, w_ref[...], preferred_element_type=jnp.float32) + b_ref[...]
    z = jnp.maximum(z, 0.0)
    pooled = jnp.dot(pool_ref[...], z, preferred_element_type=jnp.float32)
    out_ref[...] = pooled.reshape(out_ref.shape).astype(out_ref.dtype)


def _pyramid_kernel(x_ref, w_ref, scale_ref, shift_ref, pool_ref, out_ref,
                    xp_scr, col_scr):
    # 3x3 conv + bias + ReLU + 2x2 mean pool, fused (synthetic pyramid level).
    p = _conv3x3_rows(x_ref, w_ref, scale_ref, shift_ref, xp_scr, col_scr)
    pooled = jnp.dot(pool_ref[...], p, preferred_element_type=jnp.float32)
    out_ref[...] = pooled.reshape(out_ref.shape).astype(out_ref.dtype)


def _head_kernel(x_ref, w_ref, scale_ref, shift_ref, wc_ref, bc_ref, out_ref,
                 xp_scr, col_scr):
    # Dropout(identity) -> Conv3x3 -> BN -> ReLU -> fused 1x1 box/cls conv.
    p1 = _conv3x3_rows(x_ref, w_ref, scale_ref, shift_ref, xp_scr, col_scr)
    y = jnp.dot(p1.astype(jnp.bfloat16), wc_ref[...],
                preferred_element_type=jnp.float32) + bc_ref[...]
    out_ref[...] = y.reshape(out_ref.shape).astype(out_ref.dtype)


# ----------------------------------------------------------------------------
# Wrappers (grid over batch, one image per grid step)
# ----------------------------------------------------------------------------
def _pool_matrix(H, W):
    """(H/2*W/2, H*W) matrix of 0.25 weights implementing 2x2 mean pooling."""
    Ho, Wo = H // 2, W // 2
    m = np.zeros((Ho * Wo, H * W), np.float32)
    for i in range(Ho):
        for j in range(Wo):
            for di in range(2):
                for dj in range(2):
                    m[i * Wo + j, (2 * i + di) * W + (2 * j + dj)] = 0.25
    return jnp.asarray(m)


def fused_stem(x, w, b):
    """1x1 conv + ReLU + 2x2 mean pool. x: (N,H,W,Cin) f32 -> (N,H/2,W/2,C) bf16."""
    N, H, W, Cin = x.shape
    C = w.shape[-1]
    pool = _pool_matrix(H, W)
    return pl.pallas_call(
        _stem_kernel,
        out_shape=jax.ShapeDtypeStruct((N, H // 2, W // 2, C), jnp.bfloat16),
        grid=(N,),
        in_specs=[
            pl.BlockSpec((1, H, W, Cin), lambda n: (n, 0, 0, 0)),
            pl.BlockSpec((Cin, C), lambda n: (0, 0)),
            pl.BlockSpec((1, C), lambda n: (0, 0)),
            pl.BlockSpec((H * W // 4, H * W), lambda n: (0, 0)),
        ],
        out_specs=pl.BlockSpec((1, H // 2, W // 2, C), lambda n: (n, 0, 0, 0)),
        compiler_params=pltpu.CompilerParams(dimension_semantics=("parallel",)),
    )(x, w, b.reshape(1, C), pool)


def fused_conv3x3_pool(x, w3, scale, shift):
    """3x3 conv + affine + ReLU + 2x2 mean pool. x bf16 -> bf16."""
    N, H, W, C = x.shape
    Cout = w3.shape[-1]
    pool = _pool_matrix(H, W)
    return pl.pallas_call(
        _pyramid_kernel,
        out_shape=jax.ShapeDtypeStruct((N, H // 2, W // 2, Cout), jnp.bfloat16),
        grid=(N,),
        in_specs=[
            pl.BlockSpec((1, H, W, C), lambda n: (n, 0, 0, 0)),
            pl.BlockSpec((9 * C, Cout), lambda n: (0, 0)),
            pl.BlockSpec((1, Cout), lambda n: (0, 0)),
            pl.BlockSpec((1, Cout), lambda n: (0, 0)),
            pl.BlockSpec((H * W // 4, H * W), lambda n: (0, 0)),
        ],
        out_specs=pl.BlockSpec((1, H // 2, W // 2, Cout), lambda n: (n, 0, 0, 0)),
        scratch_shapes=[pltpu.VMEM((H + 2, W + 2, C), jnp.float32),
                        pltpu.VMEM((H * W, 9 * C), jnp.bfloat16)],
        compiler_params=pltpu.CompilerParams(dimension_semantics=("parallel",)),
    )(x, w3, scale.reshape(1, Cout), shift.reshape(1, Cout), pool)


def fused_head(x, w3, scale, shift, w_comb, b_comb):
    """Conv3x3+BN+ReLU fused with the 1x1 box/cls conv. Output is lane-dense
    (padded to a multiple of 128 channels); caller slices the real channels."""
    N, H, W, C = x.shape
    Cout = w3.shape[-1]
    Cpad = w_comb.shape[-1]
    return pl.pallas_call(
        _head_kernel,
        out_shape=jax.ShapeDtypeStruct((N, H, W, Cpad), jnp.float32),
        grid=(N,),
        in_specs=[
            pl.BlockSpec((1, H, W, C), lambda n: (n, 0, 0, 0)),
            pl.BlockSpec((9 * C, Cout), lambda n: (0, 0)),
            pl.BlockSpec((1, Cout), lambda n: (0, 0)),
            pl.BlockSpec((1, Cout), lambda n: (0, 0)),
            pl.BlockSpec((Cout, Cpad), lambda n: (0, 0)),
            pl.BlockSpec((1, Cpad), lambda n: (0, 0)),
        ],
        out_specs=pl.BlockSpec((1, H, W, Cpad), lambda n: (n, 0, 0, 0)),
        scratch_shapes=[pltpu.VMEM((H + 2, W + 2, C), jnp.float32),
                        pltpu.VMEM((H * W, 9 * C), jnp.bfloat16)],
        compiler_params=pltpu.CompilerParams(dimension_semantics=("parallel",)),
    )(x, w3, scale.reshape(1, Cout), shift.reshape(1, Cout),
      w_comb, b_comb.reshape(1, Cpad))


# ----------------------------------------------------------------------------
# Parameter construction (deterministic, synthetic)
# ----------------------------------------------------------------------------
def init_params(key, in_ch=3, usize=128, num_anchors=6, num_classes=1,
                num_features=3):
    keys = jax.random.split(key, 128)
    ki = iter(keys)

    def nrm(shape, s=0.05):
        return (s * jax.random.normal(next(ki), shape)).astype(jnp.float32)

    params = {}

    # TODO(synk): BackBoneNet('resnet101') and FPNNet source was not provided;
    # stand in a tiny synthetic pyramid: 1x1 stem conv + ReLU + 2x2 mean pool,
    # then (num_features-1) x [3x3 conv + ReLU + 2x2 mean pool], all `usize` ch.
    params["stem"] = dict(w=nrm((in_ch, usize)), b=nrm((usize,)))
    params["pyramid"] = []
    for _ in range(num_features - 1):
        w3 = nrm((9, usize, usize)).reshape(9 * usize, usize).astype(jnp.bfloat16)
        params["pyramid"].append(dict(w3=w3,
                                      scale=jnp.ones((usize,), jnp.float32),
                                      shift=nrm((usize,))))

    A, C1, eps = num_anchors, 1 + num_classes, 1e-5
    n_out = A * (4 + C1)
    n_pad = ((n_out + 127) // 128) * 128   # lane-dense head output channels
    params["heads"] = []
    for _ in range(num_features):
        w3 = nrm((9, usize, usize)).reshape(9 * usize, usize).astype(jnp.bfloat16)
        b3 = nrm((usize,))
        gamma = 1.0 + nrm((usize,), 0.1)
        beta = nrm((usize,), 0.1)
        rmean = nrm((usize,), 0.1)
        rvar = 1.0 + jnp.abs(nrm((usize,), 0.1))
        scale = gamma / jnp.sqrt(rvar + eps)
        shift = beta - rmean * scale + b3 * scale   # fold conv bias + BN (eval)

        w_box = nrm((A * 4, usize))
        b_box = nrm((A * 4,))
        w_cls = nrm((A * C1, usize))
        b_cls = nrm((A * C1,))
        # Interleave per anchor: [box(4), cls(1+num_classes)], matching
        # torch.cat((p_box, p_cls), 2).view(bs, -1, h, w).
        w_comb = jnp.concatenate(
            [w_box.reshape(A, 4, usize), w_cls.reshape(A, C1, usize)], axis=1
        ).reshape(n_out, usize).T                       # (usize, n_out)
        b_comb = jnp.concatenate(
            [b_box.reshape(A, 4), b_cls.reshape(A, C1)], axis=1).reshape(-1)
        w_comb_p = jnp.zeros((usize, n_pad), jnp.float32)
        w_comb_p = w_comb_p.at[:, :n_out].set(w_comb).astype(jnp.bfloat16)
        b_comb_p = jnp.zeros((n_pad,), jnp.float32).at[:n_out].set(b_comb)

        params["heads"].append(dict(w3=w3, bn_scale=scale, bn_shift=shift,
                                    w_comb=w_comb_p, b_comb=b_comb_p,
                                    n_out=n_out))
    return params


# ----------------------------------------------------------------------------
# SSDNet2 forward (eval semantics)
# ----------------------------------------------------------------------------
def ssdnet2_forward(x_nchw, params):
    x = jnp.transpose(x_nchw, (0, 2, 3, 1)).astype(jnp.float32)  # NCHW -> NHWC

    # Synthetic backbone + FPN stand-in (see TODO in init_params).
    feats = [fused_stem(x, params["stem"]["w"], params["stem"]["b"])]
    for lvl in params["pyramid"]:
        feats.append(fused_conv3x3_pool(feats[-1], lvl["w3"],
                                        lvl["scale"], lvl["shift"]))

    # SSD heads: one fused kernel per level; slice away lane padding.
    out = []
    for i, head in enumerate(params["heads"]):
        y = fused_head(feats[i], head["w3"], head["bn_scale"], head["bn_shift"],
                       head["w_comb"], head["b_comb"])
        out.append(y[..., :head["n_out"]])   # == torch permute(0,2,3,1) result
    return out


# ----------------------------------------------------------------------------
# Pure-JAX reference (same algebra / same bf16 cast points) for validation
# ----------------------------------------------------------------------------
def _ref_pool2x2(y):
    N, H, W, C = y.shape
    return y.reshape(N, H // 2, 2, W // 2, 2, C).mean(axis=(2, 4))


def _ref_conv3x3_affine_relu(x_bf16, w3, scale, shift):
    N, H, W, C = x_bf16.shape
    Cout = w3.shape[-1]
    xp = jnp.pad(x_bf16.astype(jnp.float32), ((0, 0), (1, 1), (1, 1), (0, 0)))
    w = w3.astype(jnp.float32).reshape(9, C, Cout)
    acc = jnp.zeros((N, H, W, Cout), jnp.float32)
    for kh in range(3):
        for kw in range(3):
            acc = acc + jnp.einsum('nhwc,cd->nhwd',
                                   xp[:, kh:kh + H, kw:kw + W, :],
                                   w[kh * 3 + kw],
                                   precision=jax.lax.Precision.HIGHEST)
    return jnp.maximum(acc * scale + shift, 0.0)


def _ref_forward(x_nchw, params):
    x = jnp.transpose(x_nchw, (0, 2, 3, 1)).astype(jnp.float32)
    z = jnp.einsum('nhwc,cd->nhwd', x, params["stem"]["w"],
                   precision=jax.lax.Precision.HIGHEST) + params["stem"]["b"]
    cur = _ref_pool2x2(jnp.maximum(z, 0.0)).astype(jnp.bfloat16)
    feats = [cur]
    for lvl in params["pyramid"]:
        p = _ref_conv3x3_affine_relu(cur, lvl["w3"], lvl["scale"], lvl["shift"])
        cur = _ref_pool2x2(p).astype(jnp.bfloat16)
        feats.append(cur)
    outs = []
    for i, head in enumerate(params["heads"]):
        p1 = _ref_conv3x3_affine_relu(feats[i], head["w3"],
                                      head["bn_scale"], head["bn_shift"])
        y = jnp.einsum('nhwc,cd->nhwd',
                       p1.astype(jnp.bfloat16).astype(jnp.float32),
                       head["w_comb"].astype(jnp.float32),
                       precision=jax.lax.Precision.HIGHEST) + head["b_comb"]
        outs.append(y[..., :head["n_out"]])
    return outs


if __name__ == "__main__":
    key = jax.random.PRNGKey(0)
    kx, kp = jax.random.split(key)

    # Small, module-consistent shapes: batch=2, 3-channel 16x16 image,
    # usize=128, num_anchors=6, num_classes=1, num_features=3.
    x = jax.random.normal(kx, (2, 3, 16, 16), dtype=jnp.float32)  # NCHW (torch)
    params = init_params(kp, in_ch=3, usize=128, num_anchors=6,
                         num_classes=1, num_features=3)

    outs = ssdnet2_forward(x, params)
    outs = jax.block_until_ready(outs)

    refs = _ref_forward(x, params)
    expected_shapes = [(2, 8, 8, 36), (2, 4, 4, 36), (2, 2, 2, 36)]
    for o, r, es in zip(outs, refs, expected_shapes):
        assert o.shape == es, (o.shape, es)
        assert jnp.allclose(o, r, rtol=2e-2, atol=2e-3), \
            float(jnp.max(jnp.abs(o - r)))

    print("KERNEL_OK")
</pallas_src>

<mosaic_0001>
module attributes {stable_mosaic.version = 11 : i64} {
  func.func @_stem_kernel(%arg0: i32, %arg1: memref<1x16x16x3xf32, #tpu.memory_space<vmem>>, %arg2: memref<3x128xf32, #tpu.memory_space<vmem>>, %arg3: memref<1x128xf32, #tpu.memory_space<vmem>>, %arg4: memref<64x256xf32, #tpu.memory_space<vmem>>, %arg5: memref<1x8x8x128xbf16, #tpu.memory_space<vmem>>) attributes {dimension_semantics = [#tpu.dimension_semantics<parallel>], iteration_bounds = array<i64: 2>, scalar_prefetch = 0 : i64, scratch_operands = 0 : i64, tpu.core_type = #tpu.core_type<tc>, window_params = [{transform_indices = @transform_0, window_bounds = array<i64: 1, 16, 16, 3>}, {pipeline_mode = #tpu.pipeline_mode<synchronous>, transform_indices = @transform_1, window_bounds = array<i64: 3, 128>}, {pipeline_mode = #tpu.pipeline_mode<synchronous>, transform_indices = @transform_2, window_bounds = array<i64: 1, 128>}, {pipeline_mode = #tpu.pipeline_mode<synchronous>, transform_indices = @transform_3, window_bounds = array<i64: 64, 256>}, {transform_indices = @transform_4, window_bounds = array<i64: 1, 8, 8, 128>}]} {
    %c0 = arith.constant 0 : index
    %c0_0 = arith.constant 0 : index
    %c0_1 = arith.constant 0 : index
    %c0_2 = arith.constant 0 : index
    %0 = vector.load %arg1[%c0, %c0_0, %c0_1, %c0_2] : memref<1x16x16x3xf32, #tpu.memory_space<vmem>>, vector<1x16x16x3xf32>
    %1 = vector.shape_cast %0 : vector<1x16x16x3xf32> to vector<256x3xf32>
    %c0_3 = arith.constant 0 : index
    %c0_4 = arith.constant 0 : index
    %2 = vector.load %arg2[%c0_3, %c0_4] : memref<3x128xf32, #tpu.memory_space<vmem>>, vector<3x128xf32>
    %cst = arith.constant dense<0.000000e+00> : vector<256x128xf32>
    %3 = tpu.matmul %1, %2, %cst {dimension_numbers = #tpu.dot_dimension_numbers<[1], [0], [0], [1], [0, 0, 1, 1], [], []>} : vector<256x3xf32>, vector<3x128xf32>, vector<256x128xf32> -> vector<256x128xf32>
    %c0_5 = arith.constant 0 : index
    %c0_6 = arith.constant 0 : index
    %4 = vector.load %arg3[%c0_5, %c0_6] : memref<1x128xf32, #tpu.memory_space<vmem>>, vector<1x128xf32>
    %5 = vector.broadcast %4 : vector<1x128xf32> to vector<256x128xf32>
    %6 = arith.addf %3, %5 : vector<256x128xf32>
    %cst_7 = arith.constant 0.000000e+00 : f32
    %7 = vector.broadcast %cst_7 : f32 to vector<256x128xf32>
    %8 = arith.maximumf %6, %7 : vector<256x128xf32>
    %c0_8 = arith.constant 0 : index
    %c0_9 = arith.constant 0 : index
    %9 = vector.load %arg4[%c0_8, %c0_9] : memref<64x256xf32, #tpu.memory_space<vmem>>, vector<64x256xf32>
    %cst_10 = arith.constant dense<0.000000e+00> : vector<64x128xf32>
    %10 = tpu.matmul %9, %8, %cst_10 {dimension_numbers = #tpu.dot_dimension_numbers<[1], [0], [0], [1], [0, 0, 1, 1], [], []>} : vector<64x256xf32>, vector<256x128xf32>, vector<64x128xf32> -> vector<64x128xf32>
    %11 = vector.shape_cast %10 : vector<64x128xf32> to vector<1x8x8x128xf32>
    %12 = arith.truncf %11 : vector<1x8x8x128xf32> to vector<1x8x8x128xbf16>
    %c0_11 = arith.constant 0 : index
    %c0_12 = arith.constant 0 : index
    %c0_13 = arith.constant 0 : index
    %c0_14 = arith.constant 0 : index
    %13 = vector.load %arg5[%c0_11, %c0_12, %c0_13, %c0_14] : memref<1x8x8x128xbf16, #tpu.memory_space<vmem>>, vector<1x8x8x128xbf16>
    tpu.vector_store %arg5[%c0_11, %c0_12, %c0_13, %c0_14], %12 {strides = array<i32>} : memref<1x8x8x128xbf16, #tpu.memory_space<vmem>>, vector<1x8x8x128xbf16>,
    return
  }
  func.func @transform_0(%arg0: i32) -> (i32, i32, i32, i32) {
    %c0_i32 = arith.constant 0 : i32
    %c0_i32_0 = arith.constant 0 : i32
    %c0_i32_1 = arith.constant 0 : i32
    %c0_i32_2 = arith.constant 0 : i32
    return %arg0, %c0_i32, %c0_i32_0, %c0_i32_1 : i32, i32, i32, i32
  }
  func.func @transform_1(%arg0: i32) -> (i32, i32) {
    %c0_i32 = arith.constant 0 : i32
    %c0_i32_0 = arith.constant 0 : i32
    %c0_i32_1 = arith.constant 0 : i32
    return %c0_i32, %c0_i32_0 : i32, i32
  }
  func.func @transform_2(%arg0: i32) -> (i32, i32) {
    %c0_i32 = arith.constant 0 : i32
    %c0_i32_0 = arith.constant 0 : i32
    %c0_i32_1 = arith.constant 0 : i32
    return %c0_i32, %c0_i32_0 : i32, i32
  }
  func.func @transform_3(%arg0: i32) -> (i32, i32) {
    %c0_i32 = arith.constant 0 : i32
    %c0_i32_0 = arith.constant 0 : i32
    %c0_i32_1 = arith.constant 0 : i32
    return %c0_i32, %c0_i32_0 : i32, i32
  }
  func.func @transform_4(%arg0: i32) -> (i32, i32, i32, i32) {
    %c0_i32 = arith.constant 0 : i32
    %c0_i32_0 = arith.constant 0 : i32
    %c0_i32_1 = arith.constant 0 : i32
    %c0_i32_2 = arith.constant 0 : i32
    return %arg0, %c0_i32, %c0_i32_0, %c0_i32_1 : i32, i32, i32, i32
  }
}

</mosaic_0001>

<llo_original>
// kernel: tpu_custom_call.1
$region0: #{tpu_custom_call.1}
  #allocation0 [shape = 'u32[]', space=smem, size = 0x4, offset = 0x4, fixed_abs, tag = 'smem constant byte address 0x4 - core index']
  #allocation1 [shape = 'u32[144,128]{1,0:T(1,128)}', space=vmem, size = 0x12000, scoped, tag = 'internal scratch']
  %s0 = inlined_call_operand.vmem [shape: f32[2,16,16,3], index: 0, kind: input, shape index: {}]
  %s1 = inlined_call_operand.vmem [shape: f32[3,128], index: 1, kind: input, shape index: {}]
  %s2 = inlined_call_operand.vmem [shape: f32[1,128], index: 2, kind: input, shape index: {}]
  %s3 = inlined_call_operand.vmem [shape: f32[64,256], index: 3, kind: input, shape index: {}]
  %s4 = inlined_call_operand.hbm [shape: bf16[2,8,8,128], index: 4, kind: output, shape index: {}]
  %s5 = sld [smem:[#allocation0]]
  $region49: #{tpu_custom_call.1} parent=0
    _
  %s7 = ssub.s32 1, %s5
  %s8 = scalar_select 0, %s7, %s5
  $region1: #{tpu_custom_call.1} parent=0
    #allocation2 [shape = 'u8[32768]{0}', space=vmem, size = 0x8000, scoped, tag = 'output window, operand 0']
    #allocation3 [shape = 's32[2]{0}', space=sflag, size = 0x8, scoped, tag = 'scoped memory for tpu_custom_call.1']
    %9 = vsyncpa [#allocation3], 0
    %s10 = scalar_lea.sflag [#allocation3], 1
    %11 = vsyncpa %s10, 0
    loop: start=0, step=1, limit=4
    $region2: #{tpu_custom_call.1} parent=1 // loop_pre_header
      _
    $region3: #{tpu_custom_call.1} parent=1 // loop_header
      %s13 = sphi 0, %s17
      %p14 = scmp.ge.s32.totalorder %s13, 4
      %s23 = sphi 0, %s25
      %s26 = sphi 0, %s23
      %s27 = sphi 0, %s26
      %s43 = sphi 0, %s27
      %s47 = sphi 0, %s47
      %s49 = sphi 0, %s47
      %s50 = sphi 0, %s49
      %s64 = sphi 0, %s50
      %s68 = sphi 0, %s68
      %s70 = sphi 0, %s68
      %s71 = sphi 0, %s70
      %s85 = sphi 0, %s71
      %s89 = sphi 0, %s89
      %s91 = sphi 0, %s89
      %s92 = sphi 0, %s91
      %s106 = sphi 0, %s92
      %s112 = sphi 0, %s114
      %s115 = sphi 0, %s112
      %s116 = sphi 0, %s115
      %s132 = sphi 0, %s116
    $region4: #{tpu_custom_call.1} parent=1 // loop_header_branch
      %16 = sbr.rel (%p14) target = $region8
    $region5: #{tpu_custom_call.1} parent=1 // loop_body
      %s18 = ssub.s32 %s13, 1
      %s19 = ssub.s32 %s13, 2
      %s20 = sadd.s32 %s13, 1
      %s21 = ssub.s32 %s13, %s20
      %p22 = scmp.eq.s32.totalorder %s21, 0
      %s24 = sadd.s32 %s23, 1
      %s25 = scalar_select %p22, %s23, %s24
      %p28 = pneg %p22
      %p29 = scmp.eq.s32.totalorder %s13, 1
      %p30 = por %p28, %p29
      %p31 = scmp.ne.s32.totalorder %s23, %s26
      %p32 = scmp.eq.s32.totalorder %s13, 0
      %p33 = por %p31, %p32
      %p34 = scmp.ne.s32.totalorder %s23, %s26
      %p35 = scmp.eq.s32.totalorder %s18, 1
      %p36 = por %p34, %p35
      %p37 = scmp.ne.s32.totalorder %s26, %s27
      %p38 = scmp.eq.s32.totalorder %s18, 0
      %p39 = por %p37, %p38
      %p40 = scmp.ne.s32.totalorder %s26, %s27
      %p41 = scmp.eq.s32.totalorder %s19, 1
      %p42 = por %p40, %p41
      %p44 = scmp.ne.s32.totalorder %s27, %s43
      %p45 = scmp.eq.s32.totalorder %s19, 0
      %p46 = por %p44, %p45
      %s48 = sadd.s32 %s47, 1
      %p51 = scmp.eq.s32.totalorder %s13, 1
      %p52 = scmp.ne.s32.totalorder %s47, %s49
      %p53 = scmp.eq.s32.totalorder %s13, 0
      %p54 = por %p52, %p53
      %p55 = scmp.ne.s32.totalorder %s47, %s49
      %p56 = scmp.eq.s32.totalorder %s18, 1
      %p57 = por %p55, %p56
      %p58 = scmp.ne.s32.totalorder %s49, %s50
      %p59 = scmp.eq.s32.totalorder %s18, 0
      %p60 = por %p58, %p59
      %p61 = scmp.ne.s32.totalorder %s49, %s50
      %p62 = scmp.eq.s32.totalorder %s19, 1
      %p63 = por %p61, %p62
      %p65 = scmp.ne.s32.totalorder %s50, %s64
      %p66 = scmp.eq.s32.totalorder %s19, 0
      %p67 = por %p65, %p66
      %s69 = sadd.s32 %s68, 1
      %p72 = scmp.eq.s32.totalorder %s13, 1
      %p73 = scmp.ne.s32.totalorder %s68, %s70
      %p74 = scmp.eq.s32.totalorder %s13, 0
      %p75 = por %p73, %p74
      %p76 = scmp.ne.s32.totalorder %s68, %s70
      %p77 = scmp.eq.s32.totalorder %s18, 1
      %p78 = por %p76, %p77
      %p79 = scmp.ne.s32.totalorder %s70, %s71
      %p80 = scmp.eq.s32.totalorder %s18, 0
      %p81 = por %p79, %p80
      %p82 = scmp.ne.s32.totalorder %s70, %s71
      %p83 = scmp.eq.s32.totalorder %s19, 1
      %p84 = por %p82, %p83
      %p86 = scmp.ne.s32.totalorder %s71, %s85
      %p87 = scmp.eq.s32.totalorder %s19, 0
      %p88 = por %p86, %p87
      %s90 = sadd.s32 %s89, 1
      %p93 = scmp.eq.s32.totalorder %s13, 1
      %p94 = scmp.ne.s32.totalorder %s89, %s91
      %p95 = scmp.eq.s32.totalorder %s13, 0
      %p96 = por %p94, %p95
      %p97 = scmp.ne.s32.totalorder %s89, %s91
      %p98 = scmp.eq.s32.totalorder %s18, 1
      %p99 = por %p97, %p98
      %p100 = scmp.ne.s32.totalorder %s91, %s92
      %p101 = scmp.eq.s32.totalorder %s18, 0
      %p102 = por %p100, %p101
      %p103 = scmp.ne.s32.totalorder %s91, %s92
      %p104 = scmp.eq.s32.totalorder %s19, 1
      %p105 = por %p103, %p104
      %p107 = scmp.ne.s32.totalorder %s92, %s106
      %p108 = scmp.eq.s32.totalorder %s19, 0
      %p109 = por %p107, %p108
      %s110 = ssub.s32 %s13, %s20
      %p111 = scmp.eq.s32.totalorder %s110, 0
      %s113 = sadd.s32 %s112, 1
      %s114 = scalar_select %p111, %s112, %s113
      %p117 = pneg %p111
      %p118 = scmp.eq.s32.totalorder %s13, 1
      %p119 = por %p117, %p118
      %p120 = scmp.ne.s32.totalorder %s112, %s115
      %p121 = scmp.eq.s32.totalorder %s13, 0
      %p122 = por %p120, %p121
      %p123 = scmp.ne.s32.totalorder %s112, %s115
      %p124 = scmp.eq.s32.totalorder %s18, 1
      %p125 = por %p123, %p124
      %p126 = scmp.ne.s32.totalorder %s115, %s116
      %p127 = scmp.eq.s32.totalorder %s18, 0
      %p128 = por %p126, %p127
      %p129 = scmp.ne.s32.totalorder %s115, %s116
      %p130 = scmp.eq.s32.totalorder %s19, 1
      %p131 = por %p129, %p130
      %p133 = scmp.ne.s32.totalorder %s116, %s132
      %p134 = scmp.eq.s32.totalorder %s19, 0
      %p135 = por %p133, %p134
      %p136 = scmp.le.s32.totalorder 1, %s13
      %p137 = scmp.lt.s32.totalorder %s13, 3
      %p138 = pnand %p136, %p137
      %p139 = pneg %p138
      // Predicated region
      $region9: #{tpu_custom_call.1} parent=5 // pred_check
        _
      $region10: #{tpu_custom_call.1} parent=5 // pred_check_branch
        %141 = sbr.rel (%p138) target = $region12
      $region11: #{tpu_custom_call.1} parent=5 // pred_region
        %s142 = ssub.s32 %s13, 1
        // Predicated region
        $region13: #{tpu_custom_call.1} parent=11 // pred_check
          %p143 = pneg %p60
        $region14: #{tpu_custom_call.1} parent=11 // pred_check_branch
          %145 = sbr.rel (%p143) target = $region16
        $region15: #{tpu_custom_call.1} parent=11 // pred_region
          _
        $region16: #{tpu_custom_call.1} parent=11 // pred_fallthru
          _
        // Predicated region
        $region17: #{tpu_custom_call.1} parent=11 // pred_check
          %p146 = pneg %p81
        $region18: #{tpu_custom_call.1} parent=11 // pred_check_branch
          %148 = sbr.rel (%p146) target = $region20
        $region19: #{tpu_custom_call.1} parent=11 // pred_region
          _
        $region20: #{tpu_custom_call.1} parent=11 // pred_fallthru
          _
        // Predicated region
        $region21: #{tpu_custom_call.1} parent=11 // pred_check
          %p149 = pneg %p102
        $region22: #{tpu_custom_call.1} parent=11 // pred_check_branch
          %151 = sbr.rel (%p149) target = $region24
        $region23: #{tpu_custom_call.1} parent=11 // pred_region
          _
        $region24: #{tpu_custom_call.1} parent=11 // pred_fallthru
          _
      $region12: #{tpu_custom_call.1} parent=5 // pred_fallthru
        _
      %p152 = scmp.lt.s32.totalorder %s13, 2
      // Predicated region
      $region25: #{tpu_custom_call.1} parent=5 // pred_check
        %p153 = pneg %p152
      $region26: #{tpu_custom_call.1} parent=5 // pred_check_branch
        %155 = sbr.rel (%p153) target = $region28
      $region27: #{tpu_custom_call.1} parent=5 // pred_region
        // Predicated region
        $region29: #{tpu_custom_call.1} parent=27 // pred_check
          %p156 = pneg %p33
        $region30: #{tpu_custom_call.1} parent=27 // pred_check_branch
          %158 = sbr.rel (%p156) target = $region32
        $region31: #{tpu_custom_call.1} parent=27 // pred_region
          %p159 = scmp.lt.s32.totalorder %s13, 1
          %s160 = scalar_select %p159, %s13, 1
          %s161 = smul.addr %s160, 32
          %s162 = smul.addr %s161, 8
          %s163 = scalar_lea.vmem %s0, %s162
        $region32: #{tpu_custom_call.1} parent=27 // pred_fallthru
          _
      $region28: #{tpu_custom_call.1} parent=5 // pred_fallthru
        _
      %p164 = scmp.le.s32.totalorder 1, %s13
      %p165 = scmp.lt.s32.totalorder %s13, 3
      %p166 = pnand %p164, %p165
      %p167 = pneg %p166
      // Predicated region
      $region33: #{tpu_custom_call.1} parent=5 // pred_check
        _
      $region34: #{tpu_custom_call.1} parent=5 // pred_check_branch
        %169 = sbr.rel (%p166) target = $region36
      $region35: #{tpu_custom_call.1} parent=5 // pred_region
        %s170 = ssub.s32 %s13, 1
        %p171 = scmp.lt.s32.totalorder %s18, 1
        %s172 = scalar_select %p171, %s18, 1
        %s173 = smul.addr %s172, 32
        %s174 = smul.addr %s173, 8
        %s175 = scalar_lea.vmem %s0, %s174
        %p176 = pneg %p39
        %p177 = pneg %p36
        %p178 = pneg %p60
        %p179 = pneg %p57
        %p180 = pneg %p81
        %p181 = pneg %p78
        %p182 = pneg %p102
        %p183 = pneg %p99
        %p184 = pneg %p128
        %p185 = pneg %p125
        %s186 = sand.u32 %s115, 1
        %s187 = scalar_lea.sflag [#allocation3], %s186
        %s188 = sand.u32 %s115, 1
        %s189 = smul.addr %s188, 32
        %s190 = scalar_lea.vmem [#allocation2], %s189
        %p191 = scmp.lt.s32.totalorder %s18, 1
        %s192 = scalar_select %p191, %s18, 1
        %s193 = smul.addr %s192, 32
        %s194 = smul.addr %s193, 8
        %s195 = scalar_lea.vmem %s0, %s194
        %v196 = vld [vmem:[%s195] sm:$0xff]
        %v197 = vld [vmem:[%s195 + $0x8] sm:$0xff]
        %v198 = vld [vmem:[%s195 + $0x10] sm:$0xff]
        %v199 = vld [vmem:[%s195 + $0x18] sm:$0xff]
        %v200 = vld [vmem:[%s195 + $0x20] sm:$0xff]
        %v201 = vld [vmem:[%s195 + $0x28] sm:$0xff]
        %v202 = vld [vmem:[%s195 + $0x30] sm:$0xff]
        %v203 = vld [vmem:[%s195 + $0x38] sm:$0xff]
        %v204 = vld [vmem:[%s195 + $0x40] sm:$0xff]
        %v205 = vld [vmem:[%s195 + $0x48] sm:$0xff]
        %v206 = vld [vmem:[%s195 + $0x50] sm:$0xff]
        %v207 = vld [vmem:[%s195 + $0x58] sm:$0xff]
        %v208 = vld [vmem:[%s195 + $0x60] sm:$0xff]
        %v209 = vld [vmem:[%s195 + $0x68] sm:$0xff]
        %v210 = vld [vmem:[%s195 + $0x70] sm:$0xff]
        %v211 = vld [vmem:[%s195 + $0x78] sm:$0xff]
        %v212 = vld [vmem:[%s195 + $0x80] sm:$0xff]
        %v213 = vld [vmem:[%s195 + $0x88] sm:$0xff]
        %v214 = vld [vmem:[%s195 + $0x90] sm:$0xff]
        %v215 = vld [vmem:[%s195 + $0x98] sm:$0xff]
        %v216 = vld [vmem:[%s195 + $0xa0] sm:$0xff]
        %v217 = vld [vmem:[%s195 + $0xa8] sm:$0xff]
        %v218 = vld [vmem:[%s195 + $0xb0] sm:$0xff]
        %v219 = vld [vmem:[%s195 + $0xb8] sm:$0xff]
        %v220 = vld [vmem:[%s195 + $0xc0] sm:$0xff]
        %v221 = vld [vmem:[%s195 + $0xc8] sm:$0xff]
        %v222 = vld [vmem:[%s195 + $0xd0] sm:$0xff]
        %v223 = vld [vmem:[%s195 + $0xd8] sm:$0xff]
        %v224 = vld [vmem:[%s195 + $0xe0] sm:$0xff]
        %v225 = vld [vmem:[%s195 + $0xe8] sm:$0xff]
        %v226 = vld [vmem:[%s195 + $0xf0] sm:$0xff]
        %v227 = vld [vmem:[%s195 + $0xf8] sm:$0xff]
        %v228 = vld [vmem:[%s1] sm:$0x7]
        %v229 = vld [vmem:[%s2] sm:$0x1]
        %v231 = vlaneseq
        %v232 = vshrl.u32 %v231, 7
        %v233 = vsub.s32 0, %v232
        %v234 = vrot.slane %v229, %v233
        %vm236 = vcmask 23552
        %v238 = vsel %vm236, %v196, 0
        %v241 = vsel %vm236, %v197, 0
        %v244 = vsel %vm236, %v198, 0
        %v247 = vsel %vm236, %v199, 0
        %v250 = vsel %vm236, %v200, 0
        %v253 = vsel %vm236, %v201, 0
        %v256 = vsel %vm236, %v202, 0
        %v259 = vsel %vm236, %v203, 0
        %v262 = vsel %vm236, %v204, 0
        %v265 = vsel %vm236, %v205, 0
        %v268 = vsel %vm236, %v206, 0
        %v271 = vsel %vm236, %v207, 0
        %v274 = vsel %vm236, %v208, 0
        %v277 = vsel %vm236, %v209, 0
        %v280 = vsel %vm236, %v210, 0
        %v283 = vsel %vm236, %v211, 0
        %v286 = vsel %vm236, %v212, 0
        %v289 = vsel %vm236, %v213, 0
        %v292 = vsel %vm236, %v214, 0
        %v295 = vsel %vm236, %v215, 0
        %v298 = vsel %vm236, %v216, 0
        %v301 = vsel %vm236, %v217, 0
        %v304 = vsel %vm236, %v218, 0
        %v307 = vsel %vm236, %v219, 0
        %v310 = vsel %vm236, %v220, 0
        %v313 = vsel %vm236, %v221, 0
        %v316 = vsel %vm236, %v222, 0
        %v319 = vsel %vm236, %v223, 0
        %v322 = vsel %vm236, %v224, 0
        %v325 = vsel %vm236, %v225, 0
        %v328 = vsel %vm236, %v226, 0
        %v331 = vsel %vm236, %v227, 0
        %vm333 = vcmask 1042432
        %v335 = vsel %vm333, %v228, 0
        %337 = vmatprep.subr.mxu0 0.0
        %338 = vmatpush1.msra.mxu0 0.0
        %339 = vmatprep.subr.mxu0 0.0
        %340 = vmatpush1.msra.mxu0 0.0
        %341 = vmatprep.subr.mxu0 0.0
        %342 = vmatpush1.msra.mxu0 0.0
        %343 = vmatprep.subr.mxu0 0.0
        %344 = vmatpush1.msra.mxu0 0.0
        %345 = vmatprep.subr.mxu0 0.0
        %346 = vmatpush1.msra.mxu0 0.0
        %347 = vmatprep.subr.mxu0 0.0
        %348 = vmatpush1.msra.mxu0 0.0
        %349 = vmatprep.subr.mxu0 0.0
        %350 = vmatpush1.msra.mxu0 0.0
        %351 = vmatprep.subr.mxu0 0.0
        %352 = vmatpush1.msra.mxu0 0.0
        %353 = vmatprep.subr.mxu0 0.0
        %354 = vmatpush1.msra.mxu0 0.0
        %355 = vmatprep.subr.mxu0 0.0
        %356 = vmatpush1.msra.mxu0 0.0
        %357 = vmatprep.subr.mxu0 0.0
        %358 = vmatpush1.msra.mxu0 0.0
        %359 = vmatprep.subr.mxu0 0.0
        %360 = vmatpush1.msra.mxu0 0.0
        %361 = vmatprep.subr.mxu0 0.0
        %362 = vmatpush1.msra.mxu0 0.0
        %363 = vmatprep.subr.mxu0 0.0
        %364 = vmatpush1.msra.mxu0 0.0
        %365 = vmatprep.subr.mxu0 0.0
        %366 = vmatpush1.msra.mxu0 0.0
        %367 = vmatprep.subr.mxu0 0.0
        %368 = vmatpush1.msra.mxu0 %v335
        %369 = vmatprep.subr.mxu0 0.0
        %370 = vmatpush2.msra.mxu0 0.0
        %371 = vmatprep.subr.mxu0 0.0
        %372 = vmatpush2.msra.mxu0 0.0
        %373 = vmatprep.subr.mxu0 0.0
        %374 = vmatpush2.msra.mxu0 0.0
        %375 = vmatprep.subr.mxu0 0.0
        %376 = vmatpush2.msra.mxu0 0.0
        %377 = vmatprep.subr.mxu0 0.0
        %378 = vmatpush2.msra.mxu0 0.0
        %379 = vmatprep.subr.mxu0 0.0
        %380 = vmatpush2.msra.mxu0 0.0
        %381 = vmatprep.subr.mxu0 0.0
        %382 = vmatpush2.msra.mxu0 0.0
        %383 = vmatprep.subr.mxu0 0.0
        %384 = vmatpush2.msra.mxu0 0.0
        %385 = vmatprep.subr.mxu0 0.0
        %386 = vmatpush2.msra.mxu0 0.0
        %387 = vmatprep.subr.mxu0 0.0
        %388 = vmatpush2.msra.mxu0 0.0
        %389 = vmatprep.subr.mxu0 0.0
        %390 = vmatpush2.msra.mxu0 0.0
        %391 = vmatprep.subr.mxu0 0.0
        %392 = vmatpush2.msra.mxu0 0.0
        %393 = vmatprep.subr.mxu0 0.0
        %394 = vmatpush2.msra.mxu0 0.0
        %395 = vmatprep.subr.mxu0 0.0
        %396 = vmatpush2.msra.mxu0 0.0
        %397 = vmatprep.subr.mxu0 0.0
        %398 = vmatpush2.msra.mxu0 0.0
        %399 = vmatprep.subr.mxu0 0.0
        %400 = vmatpush2.msra.mxu0 0.0
        %401 = vmatprep.mubr.f32.mxu0 0.0
        %402 = vmatmul.mubr.f32.gmra.mxu0 %v238
        %v403 = vpop.f32.mrf.mxu0
        %v404 = vadd.f32 %v234, %v403
        %v405 = vpop.f32.mrf.mxu0
        %406 = vmatprep.mubr.f32.mxu0 0.0
        %407 = vmatmul.mubr.f32.gmra.mxu0 %v241
        %v408 = vpop.f32.mrf.mxu0
        %v409 = vadd.f32 %v234, %v408
        %v410 = vpop.f32.mrf.mxu0
        %411 = vmatprep.mubr.f32.mxu0 0.0
        %412 = vmatmul.mubr.f32.gmra.mxu0 %v244
        %v413 = vpop.f32.mrf.mxu0
        %v414 = vadd.f32 %v234, %v413
        %v415 = vpop.f32.mrf.mxu0
        %416 = vmatprep.mubr.f32.mxu0 0.0
        %417 = vmatmul.mubr.f32.gmra.mxu0 %v247
        %v418 = vpop.f32.mrf.mxu0
        %v419 = vadd.f32 %v234, %v418
        %v420 = vpop.f32.mrf.mxu0
        %421 = vmatprep.mubr.f32.mxu0 0.0
        %422 = vmatmul.mubr.f32.gmra.mxu0 %v250
        %v423 = vpop.f32.mrf.mxu0
        %v424 = vadd.f32 %v234, %v423
        %v425 = vpop.f32.mrf.mxu0
        %426 = vmatprep.mubr.f32.mxu0 0.0
        %427 = vmatmul.mubr.f32.gmra.mxu0 %v253
        %v428 = vpop.f32.mrf.mxu0
        %v429 = vadd.f32 %v234, %v428
        %v430 = vpop.f32.mrf.mxu0
        %431 = vmatprep.mubr.f32.mxu0 0.0
        %432 = vmatmul.mubr.f32.gmra.mxu0 %v256
        %v433 = vpop.f32.mrf.mxu0
        %v434 = vadd.f32 %v234, %v433
        %v435 = vpop.f32.mrf.mxu0
        %436 = vmatprep.mubr.f32.mxu0 0.0
        %437 = vmatmul.mubr.f32.gmra.mxu0 %v259
        %v438 = vpop.f32.mrf.mxu0
        %v439 = vadd.f32 %v234, %v438
        %v440 = vpop.f32.mrf.mxu0
        %441 = vmatprep.mubr.f32.mxu0 0.0
        %442 = vmatmul.mubr.f32.gmra.mxu0 %v262
        %v443 = vpop.f32.mrf.mxu0
        %v444 = vadd.f32 %v234, %v443
        %v445 = vpop.f32.mrf.mxu0
        %446 = vmatprep.mubr.f32.mxu0 0.0
        %447 = vmatmul.mubr.f32.gmra.mxu0 %v265
        %v448 = vpop.f32.mrf.mxu0
        %v449 = vadd.f32 %v234, %v448
        %v450 = vpop.f32.mrf.mxu0
        %451 = vmatprep.mubr.f32.mxu0 0.0
        %452 = vmatmul.mubr.f32.gmra.mxu0 %v268
        %v453 = vpop.f32.mrf.mxu0
        %v454 = vadd.f32 %v234, %v453
        %v455 = vpop.f32.mrf.mxu0
        %456 = vmatprep.mubr.f32.mxu0 0.0
        %457 = vmatmul.mubr.f32.gmra.mxu0 %v271
        %v458 = vpop.f32.mrf.mxu0
        %v459 = vadd.f32 %v234, %v458
        %v460 = vpop.f32.mrf.mxu0
        %461 = vmatprep.mubr.f32.mxu0 0.0
        %462 = vmatmul.mubr.f32.gmra.mxu0 %v274
        %v463 = vpop.f32.mrf.mxu0
        %v464 = vadd.f32 %v234, %v463
        %v465 = vpop.f32.mrf.mxu0
        %466 = vmatprep.mubr.f32.mxu0 0.0
        %467 = vmatmul.mubr.f32.gmra.mxu0 %v277
        %v468 = vpop.f32.mrf.mxu0
        %v469 = vadd.f32 %v234, %v468
        %v470 = vpop.f32.mrf.mxu0
        %471 = vmatprep.mubr.f32.mxu0 0.0
        %472 = vmatmul.mubr.f32.gmra.mxu0 %v280
        %v473 = vpop.f32.mrf.mxu0
        %v474 = vadd.f32 %v234, %v473
        %v475 = vpop.f32.mrf.mxu0
        %476 = vmatprep.mubr.f32.mxu0 0.0
        %477 = vmatmul.mubr.f32.gmra.mxu0 %v283
        %v478 = vpop.f32.mrf.mxu0
        %v479 = vadd.f32 %v234, %v478
        %v480 = vpop.f32.mrf.mxu0
        %481 = vmatprep.mubr.f32.mxu0 0.0
        %482 = vmatmul.mubr.f32.gmra.mxu0 %v286
        %v483 = vpop.f32.mrf.mxu0
        %v484 = vadd.f32 %v234, %v483
        %v485 = vpop.f32.mrf.mxu0
        %486 = vmatprep.mubr.f32.mxu0 0.0
        %487 = vmatmul.mubr.f32.gmra.mxu0 %v289
        %v488 = vpop.f32.mrf.mxu0
        %v489 = vadd.f32 %v234, %v488
        %v490 = vpop.f32.mrf.mxu0
        %491 = vmatprep.mubr.f32.mxu0 0.0
        %492 = vmatmul.mubr.f32.gmra.mxu0 %v292
        %v493 = vpop.f32.mrf.mxu0
        %v494 = vadd.f32 %v234, %v493
        %v495 = vpop.f32.mrf.mxu0
        %496 = vmatprep.mubr.f32.mxu0 0.0
        %497 = vmatmul.mubr.f32.gmra.mxu0 %v295
        %v498 = vpop.f32.mrf.mxu0
        %v499 = vadd.f32 %v234, %v498
        %v500 = vpop.f32.mrf.mxu0
        %501 = vmatprep.mubr.f32.mxu0 0.0
        %502 = vmatmul.mubr.f32.gmra.mxu0 %v298
        %v503 = vpop.f32.mrf.mxu0
        %v504 = vadd.f32 %v234, %v503
        %v505 = vpop.f32.mrf.mxu0
        %506 = vmatprep.mubr.f32.mxu0 0.0
        %507 = vmatmul.mubr.f32.gmra.mxu0 %v301
        %v508 = vpop.f32.mrf.mxu0
        %v509 = vadd.f32 %v234, %v508
        %v510 = vpop.f32.mrf.mxu0
        %511 = vmatprep.mubr.f32.mxu0 0.0
        %512 = vmatmul.mubr.f32.gmra.mxu0 %v304
        %v513 = vpop.f32.mrf.mxu0
        %v514 = vadd.f32 %v234, %v513
        %v515 = vpop.f32.mrf.mxu0
        %516 = vmatprep.mubr.f32.mxu0 0.0
        %517 = vmatmul.mubr.f32.gmra.mxu0 %v307
        %v518 = vpop.f32.mrf.mxu0
        %v519 = vadd.f32 %v234, %v518
        %v520 = vpop.f32.mrf.mxu0
        %521 = vmatprep.mubr.f32.mxu0 0.0
        %522 = vmatmul.mubr.f32.gmra.mxu0 %v310
        %v523 = vpop.f32.mrf.mxu0
        %v524 = vadd.f32 %v234, %v523
        %v525 = vpop.f32.mrf.mxu0
        %526 = vmatprep.mubr.f32.mxu0 0.0
        %527 = vmatmul.mubr.f32.gmra.mxu0 %v313
        %v528 = vpop.f32.mrf.mxu0
        %v529 = vadd.f32 %v234, %v528
        %v530 = vpop.f32.mrf.mxu0
        %531 = vmatprep.mubr.f32.mxu0 0.0
        %532 = vmatmul.mubr.f32.gmra.mxu0 %v316
        %v533 = vpop.f32.mrf.mxu0
        %v534 = vadd.f32 %v234, %v533
        %v535 = vpop.f32.mrf.mxu0
        %536 = vmatprep.mubr.f32.mxu0 0.0
        %537 = vmatmul.mubr.f32.gmra.mxu0 %v319
        %v538 = vpop.f32.mrf.mxu0
        %v539 = vadd.f32 %v234, %v538
        %v540 = vpop.f32.mrf.mxu0
        %541 = vmatprep.mubr.f32.mxu0 0.0
        %542 = vmatmul.mubr.f32.gmra.mxu0 %v322
        %v543 = vpop.f32.mrf.mxu0
        %v544 = vadd.f32 %v234, %v543
        %v545 = vpop.f32.mrf.mxu0
        %546 = vmatprep.mubr.f32.mxu0 0.0
        %547 = vmatmul.mubr.f32.gmra.mxu0 %v325
        %v548 = vpop.f32.mrf.mxu0
        %v549 = vadd.f32 %v234, %v548
        %v550 = vpop.f32.mrf.mxu0
        %551 = vmatprep.mubr.f32.mxu0 0.0
        %552 = vmatmul.mubr.f32.gmra.mxu0 %v328
        %v553 = vpop.f32.mrf.mxu0
        %v554 = vadd.f32 %v234, %v553
        %v555 = vpop.f32.mrf.mxu0
        %556 = vmatprep.mubr.f32.mxu0 0.0
        %557 = vmatmul.mubr.f32.gmra.mxu0 %v331
        %v558 = vpop.f32.mrf.mxu0
        %v559 = vadd.f32 %v234, %v558
        %v560 = vpop.f32.mrf.mxu0
        %561 = vdwg.mxu0
        %v562 = vmax.f32 %v404, 0.0
        %v563 = vmax.f32 %v409, 0.0
        %v564 = vmax.f32 %v414, 0.0
        %v565 = vmax.f32 %v419, 0.0
        %v566 = vmax.f32 %v424, 0.0
        %v567 = vmax.f32 %v429, 0.0
        %v568 = vmax.f32 %v434, 0.0
        %v569 = vmax.f32 %v439, 0.0
        %v570 = vmax.f32 %v444, 0.0
        %v571 = vmax.f32 %v449, 0.0
        %v572 = vmax.f32 %v454, 0.0
        %v573 = vmax.f32 %v459, 0.0
        %v574 = vmax.f32 %v464, 0.0
        %v575 = vmax.f32 %v469, 0.0
        %v576 = vmax.f32 %v474, 0.0
        %v577 = vmax.f32 %v479, 0.0
        %v578 = vmax.f32 %v484, 0.0
        %v579 = vmax.f32 %v489, 0.0
        %v580 = vmax.f32 %v494, 0.0
        %v581 = vmax.f32 %v499, 0.0
        %v582 = vmax.f32 %v504, 0.0
        %v583 = vmax.f32 %v509, 0.0
        %v584 = vmax.f32 %v514, 0.0
        %v585 = vmax.f32 %v519, 0.0
        %v586 = vmax.f32 %v524, 0.0
        %v587 = vmax.f32 %v529, 0.0
        %v588 = vmax.f32 %v534, 0.0
        %v589 = vmax.f32 %v539, 0.0
        %v590 = vmax.f32 %v544, 0.0
        %v591 = vmax.f32 %v549, 0.0
        %v592 = vmax.f32 %v554, 0.0
        %v593 = vmax.f32 %v559, 0.0
        %v594 = vld [vmem:[%s3] sm:$0xff]
        %v595 = vld [vmem:[%s3 + $0x8] sm:$0xff]
        %v596 = vld [vmem:[%s3 + $0x10] sm:$0xff]
        %v597 = vld [vmem:[%s3 + $0x18] sm:$0xff]
        %v598 = vld [vmem:[%s3 + $0x20] sm:$0xff]
        %v599 = vld [vmem:[%s3 + $0x28] sm:$0xff]
        %v600 = vld [vmem:[%s3 + $0x30] sm:$0xff]
        %v601 = vld [vmem:[%s3 + $0x38] sm:$0xff]
        %v602 = vld [vmem:[%s3 + $0x40] sm:$0xff]
        %v603 = vld [vmem:[%s3 + $0x48] sm:$0xff]
        %v604 = vld [vmem:[%s3 + $0x50] sm:$0xff]
        %v605 = vld [vmem:[%s3 + $0x58] sm:$0xff]
        %v606 = vld [vmem:[%s3 + $0x60] sm:$0xff]
        %v607 = vld [vmem:[%s3 + $0x68] sm:$0xff]
        %v608 = vld [vmem:[%s3 + $0x70] sm:$0xff]
        %v609 = vld [vmem:[%s3 + $0x78] sm:$0xff]
        %610 = vmatprep.subr.mxu0 0.0
        %611 = vmatpush1.msra.mxu0 %v577
        %612 = vmatprep.subr.mxu0 0.0
        %613 = vmatpush1.msra.mxu0 %v576
        %614 = vmatprep.subr.mxu0 0.0
        %615 = vmatpush1.msra.mxu0 %v575
        %616 = vmatprep.subr.mxu0 0.0
        %617 = vmatpush1.msra.mxu0 %v574
        %618 = vmatprep.subr.mxu0 0.0
        %619 = vmatpush1.msra.mxu0 %v573
        %620 = vmatprep.subr.mxu0 0.0
        %621 = vmatpush1.msra.mxu0 %v572
        %622 = vmatprep.subr.mxu0 0.0
        %623 = vmatpush1.msra.mxu0 %v571
        %624 = vmatprep.subr.mxu0 0.0
        %625 = vmatpush1.msra.mxu0 %v570
        %626 = vmatprep.subr.mxu0 0.0
        %627 = vmatpush1.msra.mxu0 %v569
        %628 = vmatprep.subr.mxu0 0.0
        %629 = vmatpush1.msra.mxu0 %v568
        %630 = vmatprep.subr.mxu0 0.0
        %631 = vmatpush1.msra.mxu0 %v567
        %632 = vmatprep.subr.mxu0 0.0
        %633 = vmatpush1.msra.mxu0 %v566
        %634 = vmatprep.subr.mxu0 0.0
        %635 = vmatpush1.msra.mxu0 %v565
        %636 = vmatprep.subr.mxu0 0.0
        %637 = vmatpush1.msra.mxu0 %v564
        %638 = vmatprep.subr.mxu0 0.0
        %639 = vmatpush1.msra.mxu0 %v563
        %640 = vmatprep.subr.mxu0 0.0
        %641 = vmatpush1.msra.mxu0 %v562
        %642 = vmatprep.subr.mxu0 0.0
        %643 = vmatpush2.msra.mxu0 %v593
        %644 = vmatprep.subr.mxu0 0.0
        %645 = vmatpush2.msra.mxu0 %v592
        %646 = vmatprep.subr.mxu0 0.0
        %647 = vmatpush2.msra.mxu0 %v591
        %648 = vmatprep.subr.mxu0 0.0
        %649 = vmatpush2.msra.mxu0 %v590
        %650 = vmatprep.subr.mxu0 0.0
        %651 = vmatpush2.msra.mxu0 %v589
        %652 = vmatprep.subr.mxu0 0.0
        %653 = vmatpush2.msra.mxu0 %v588
        %654 = vmatprep.subr.mxu0 0.0
        %655 = vmatpush2.msra.mxu0 %v587
        %656 = vmatprep.subr.mxu0 0.0
        %657 = vmatpush2.msra.mxu0 %v586
        %658 = vmatprep.subr.mxu0 0.0
        %659 = vmatpush2.msra.mxu0 %v585
        %660 = vmatprep.subr.mxu0 0.0
        %661 = vmatpush2.msra.mxu0 %v584
        %662 = vmatprep.subr.mxu0 0.0
        %663 = vmatpush2.msra.mxu0 %v583
        %664 = vmatprep.subr.mxu0 0.0
        %665 = vmatpush2.msra.mxu0 %v582
        %666 = vmatprep.subr.mxu0 0.0
        %667 = vmatpush2.msra.mxu0 %v581
        %668 = vmatprep.subr.mxu0 0.0
        %669 = vmatpush2.msra.mxu0 %v580
        %670 = vmatprep.subr.mxu0 0.0
        %671 = vmatpush2.msra.mxu0 %v579
        %672 = vmatprep.subr.mxu0 0.0
        %673 = vmatpush2.msra.mxu0 %v578
        %674 = vmatprep.mubr.f32.mxu0 %v595
        %675 = vmatmul.mubr.f32.gmra.mxu0 %v594
        %v676 = vpop.f32.mrf.mxu0
        %v677 = vadd.f32 0.0, %v676
        %v678 = vpop.f32.mrf.mxu0
        %679 = vmatprep.mubr.f32.mxu0 %v597
        %680 = vmatmul.mubr.f32.gmra.mxu0 %v596
        %v681 = vpop.f32.mrf.mxu0
        %v682 = vadd.f32 0.0, %v681
        %v683 = vpop.f32.mrf.mxu0
        %684 = vmatprep.mubr.f32.mxu0 %v599
        %685 = vmatmul.mubr.f32.gmra.mxu0 %v598
        %v686 = vpop.f32.mrf.mxu0
        %v687 = vadd.f32 0.0, %v686
        %v688 = vpop.f32.mrf.mxu0
        %689 = vmatprep.mubr.f32.mxu0 %v601
        %690 = vmatmul.mubr.f32.gmra.mxu0 %v600
        %v691 = vpop.f32.mrf.mxu0
        %v692 = vadd.f32 0.0, %v691
        %v693 = vpop.f32.mrf.mxu0
        %694 = vmatprep.mubr.f32.mxu0 %v603
        %695 = vmatmul.mubr.f32.gmra.mxu0 %v602
        %v696 = vpop.f32.mrf.mxu0
        %v697 = vadd.f32 0.0, %v696
        %v698 = vpop.f32.mrf.mxu0
        %699 = vmatprep.mubr.f32.mxu0 %v605
        %700 = vmatmul.mubr.f32.gmra.mxu0 %v604
        %v701 = vpop.f32.mrf.mxu0
        %v702 = vadd.f32 0.0, %v701
        %v703 = vpop.f32.mrf.mxu0
        %704 = vmatprep.mubr.f32.mxu0 %v607
        %705 = vmatmul.mubr.f32.gmra.mxu0 %v606
        %v706 = vpop.f32.mrf.mxu0
        %v707 = vadd.f32 0.0, %v706
        %v708 = vpop.f32.mrf.mxu0
        %709 = vmatprep.mubr.f32.mxu0 %v609
        %710 = vmatmul.mubr.f32.gmra.mxu0 %v608
        %v711 = vpop.f32.mrf.mxu0
        %v712 = vadd.f32 0.0, %v711
        %v713 = vpop.f32.mrf.mxu0
        %714 = vdwg.mxu0
        %v715 = vpack.c.bf16 %v677, %v677
        %v716 = vpack.c.bf16 %v682, %v682
        %v717 = vpack.c.bf16 %v687, %v687
        %v718 = vpack.c.bf16 %v692, %v692
        %v719 = vpack.c.bf16 %v697, %v697
        %v720 = vpack.c.bf16 %v702, %v702
        %v721 = vpack.c.bf16 %v707, %v707
        %v722 = vpack.c.bf16 %v712, %v712
        %723 = vst [vmem:[%s190] sm:$0xf] %v715
        %724 = vst [vmem:[%s190 + $0x4] sm:$0xf] %v716
        %725 = vst [vmem:[%s190 + $0x8] sm:$0xf] %v717
        %726 = vst [vmem:[%s190 + $0xc] sm:$0xf] %v718
        %727 = vst [vmem:[%s190 + $0x10] sm:$0xf] %v719
        %728 = vst [vmem:[%s190 + $0x14] sm:$0xf] %v720
        %729 = vst [vmem:[%s190 + $0x18] sm:$0xf] %v721
        %730 = vst [vmem:[%s190 + $0x1c] sm:$0xf] %v722
        %s731 = sand.u32 %s115, 1
        %s732 = scalar_lea.sflag [#allocation3], %s731
        %s733 = sand.u32 %s115, 1
        %s734 = smul.addr %s733, 32
        %s735 = scalar_lea.vmem [#allocation2], %s734
        // Predicated region
        $region37: #{tpu_custom_call.1} parent=35 // pred_check
          %p736 = pneg %p125
        $region38: #{tpu_custom_call.1} parent=35 // pred_check_branch
          %738 = sbr.rel (%p736) target = $region40
        $region39: #{tpu_custom_call.1} parent=35 // pred_region
          %s740 = ssub.s32 512, 512
          %741 = vsyncadd %s732, %s740
          %s742 = smul.addr %s18, 8
          %s743 = smul.addr %s742, 64
          %s744 = scalar_lea.hbm %s4, %s743
          %s745 = sshll.u32 %s735, 4
          %s746 = int_to_ptr.vmem [resolvable:$true] %s745
          %751 = dma.vmem_to_hbm [thread:$0]  %s746, 512, %s744, %s732, 64, 64, 4
        $region40: #{tpu_custom_call.1} parent=35 // pred_fallthru
          _
      $region36: #{tpu_custom_call.1} parent=5 // pred_fallthru
        _
      %p752 = scmp.le.s32.totalorder 2, %s13
      // Predicated region
      $region41: #{tpu_custom_call.1} parent=5 // pred_check
        %p753 = pneg %p752
      $region42: #{tpu_custom_call.1} parent=5 // pred_check_branch
        %755 = sbr.rel (%p753) target = $region44
      $region43: #{tpu_custom_call.1} parent=5 // pred_region
        %s756 = ssub.s32 %s13, 2
        // Predicated region
        $region45: #{tpu_custom_call.1} parent=43 // pred_check
          %p757 = pneg %p131
        $region46: #{tpu_custom_call.1} parent=43 // pred_check_branch
          %759 = sbr.rel (%p757) target = $region48
        $region47: #{tpu_custom_call.1} parent=43 // pred_region
          %s760 = sand.u32 %s116, 1
          %s761 = scalar_lea.sflag [#allocation3], %s760
          %s762 = sand.u32 %s116, 1
          %s763 = smul.addr %s762, 32
          %s764 = scalar_lea.vmem [#allocation2], %s763
          %765 = dma.done %s761, 512
        $region48: #{tpu_custom_call.1} parent=43 // pred_fallthru
          _
      $region44: #{tpu_custom_call.1} parent=5 // pred_fallthru
        _
    $region6: #{tpu_custom_call.1} parent=1 // loop_footer
      %s17 = sadd.s32 1, %s13
    $region7: #{tpu_custom_call.1} parent=1 // loop_footer_branch
      %12 = sbr.rel target = $region3
    $region8: #{tpu_custom_call.1} parent=1 // loop_exit
      _
    %766 = vsyncpa [#allocation3], 1
    %s767 = scalar_lea.sflag [#allocation3], 1
    %768 = vsyncpa %s767, 1

</llo_original>
